<compile_context>
chip_gen: v5e
topology: v5e:2x2
jax: 0.10.0
libtpu: 0.0.40
codegen_flags: <defaults>
</compile_context>

<pallas_src>
import functools

import jax
import jax.numpy as jnp
from jax.experimental import pallas as pl
from jax.experimental.pallas import tpu as pltpu

_LANE = 128
_MAX_TILE_S = 2048
_MAX_BLOCK_B = 8
# Budget for the double-buffered x/out streaming blocks; weight/bias buffers and
# compiler scratch live in the remaining headroom below _VMEM_LIMIT_BYTES.
_VMEM_BLOCK_BUDGET = 32 * 1024 * 1024
_VMEM_LIMIT_BYTES = 48 * 1024 * 1024  # safe on v5e/v6e (128 MiB) and v7x (64 MiB)


def _round_up(x, m):
    return (x + m - 1) // m * m


def _select_tiles(B, C_in, C_out, S, in_bytes, out_bytes):
    """Pick (tile_s, block_b) so double-buffered x/out blocks fit the budget."""
    # Bytes of streamed block buffers per lane column (x + out, double-buffered).
    per_lane = 2 * (C_in * in_bytes + C_out * out_bytes)
    max_tile = max(_LANE, (_VMEM_BLOCK_BUDGET // max(per_lane, 1)) // _LANE * _LANE)
    tile_s = min(max_tile, _MAX_TILE_S, _round_up(S, _LANE))
    num_s = pl.cdiv(S, tile_s)

    # If the spatial axis gives too few grid steps, block several batches per
    # step (amortizes ~0.35us/step overhead, keeps DMAs large).
    block_b = 1
    if num_s <= 2 and B > 1:
        per_batch = tile_s * per_lane
        block_b = max(1, min(B, _VMEM_BLOCK_BUDGET // max(per_batch, 1), _MAX_BLOCK_B))
    return tile_s, block_b


def _conv1x1_kernel(x_ref, w_ref, b_ref, o_ref):
    # x_ref : (bb, C_in, tS)   VMEM
    # w_ref : (C_out, C_in)    VMEM (resident, same block every grid point)
    # b_ref : (C_out, 1)       VMEM
    # o_ref : (bb, C_out, tS)  VMEM
    w = w_ref[...]
    bias = b_ref[...]
    bb = x_ref.shape[0]
    for bi in range(bb):  # bb is a small static block size -> unrolled
        y = jnp.dot(w, x_ref[bi], preferred_element_type=jnp.float32)  # (C_out, tS)
        o_ref[bi] = (y + bias).astype(o_ref.dtype)


@functools.partial(
    jax.jit, static_argnames=("tile_s", "block_b", "use_bf16_inputs")
)
def conv_nd_kernel1_layer(x, weight, bias, *, tile_s=None, block_b=None,
                          use_bf16_inputs=False):
    """x: (B, C_in, *spatial); weight: (C_out, C_in); bias: (C_out,)."""
    dims = x.shape
    B, C_in = dims[0], dims[1]
    C_out = weight.shape[0]

    # Flatten all spatial dims (glue, stays in plain JAX).
    x_flat = x.reshape(B, C_in, -1)
    S = x_flat.shape[-1]

    out_dtype = x.dtype
    in_dtype = jnp.bfloat16 if use_bf16_inputs else x_flat.dtype
    in_bytes = jnp.dtype(in_dtype).itemsize
    out_bytes = jnp.dtype(out_dtype).itemsize

    auto_ts, auto_bb = _select_tiles(B, C_in, C_out, S, in_bytes, out_bytes)
    ts = tile_s if tile_s is not None else auto_ts
    bb = block_b if block_b is not None else auto_bb

    num_s = pl.cdiv(S, ts)
    num_b = pl.cdiv(B, bb)
    S_pad = num_s * ts
    B_pad = num_b * bb

    if use_bf16_inputs:
        # Halves HBM traffic; accumulation stays f32 (tolerance decision).
        x_flat = x_flat.astype(jnp.bfloat16)
        weight = weight.astype(jnp.bfloat16)

    if S_pad != S or B_pad != B:
        x_flat = jnp.pad(x_flat, ((0, B_pad - B), (0, 0), (0, S_pad - S)))

    bias2d = bias.reshape(C_out, 1).astype(jnp.float32)

    # Put the longer parallel axis leading (v7x megacore shards the grid).
    if num_s >= num_b:
        grid = (num_s, num_b)
        x_map = lambda s, b: (b, 0, s)
        w_map = lambda s, b: (0, 0)
        o_map = lambda s, b: (b, 0, s)
    else:
        grid = (num_b, num_s)
        x_map = lambda b, s: (b, 0, s)
        w_map = lambda b, s: (0, 0)
        o_map = lambda b, s: (b, 0, s)

    cost = pl.CostEstimate(
        flops=2 * B * S * C_in * C_out,
        transcendentals=0,
        bytes_accessed=(in_bytes * B * S * C_in
                        + out_bytes * B * S * C_out
                        + in_bytes * C_in * C_out
                        + 4 * C_out),
    )

    out_flat = pl.pallas_call(
        _conv1x1_kernel,
        out_shape=jax.ShapeDtypeStruct((B_pad, C_out, S_pad), out_dtype),
        grid_spec=pltpu.PrefetchScalarGridSpec(
            num_scalar_prefetch=0,
            grid=grid,
            in_specs=[
                pl.BlockSpec((bb, C_in, ts), x_map),
                pl.BlockSpec((C_out, C_in), w_map),
                pl.BlockSpec((C_out, 1), w_map),
            ],
            out_specs=pl.BlockSpec((bb, C_out, ts), o_map),
        ),
        compiler_params=pltpu.CompilerParams(
            dimension_semantics=("parallel", "parallel"),
            vmem_limit_bytes=_VMEM_LIMIT_BYTES,
        ),
        cost_estimate=cost,
    )(x_flat, weight, bias2d)

    out = out_flat[:B, :, :S].reshape((B, C_out) + dims[2:])
    return out


if __name__ == "__main__":
    key = jax.random.PRNGKey(0)

    # --- Test 1: 2D spatial (NCHW), tile-aligned ---------------------------
    B, C_in, C_out, H, W = 2, 4, 8, 16, 16
    kx, kw, kb, key = jax.random.split(key, 4)
    x = jax.random.normal(kx, (B, C_in, H, W), dtype=jnp.float32)
    bound = 1.0 / (C_in ** 0.5)  # PyTorch default uniform bound for conv
    weight = jax.random.uniform(kw, (C_out, C_in), jnp.float32, -bound, bound)
    bias = jax.random.uniform(kb, (C_out,), jnp.float32, -bound, bound)

    y = jax.block_until_ready(conv_nd_kernel1_layer(x, weight, bias))
    ref = jnp.einsum("oc,bchw->bohw", weight, x) + bias[None, :, None, None]
    assert y.shape == (B, C_out, H, W)
    assert jnp.allclose(y, ref, atol=1e-5, rtol=1e-5)

    # --- Test 2: 3D spatial, non-tile-aligned S (exercises padding path) ---
    B2, C_in2, C_out2, D2, H2, W2 = 3, 6, 10, 5, 5, 9   # S = 225
    kx2, kw2, kb2, key = jax.random.split(key, 4)
    x2 = jax.random.normal(kx2, (B2, C_in2, D2, H2, W2), dtype=jnp.float32)
    bound2 = 1.0 / (C_in2 ** 0.5)
    weight2 = jax.random.uniform(kw2, (C_out2, C_in2), jnp.float32, -bound2, bound2)
    bias2 = jax.random.uniform(kb2, (C_out2,), jnp.float32, -bound2, bound2)

    y2 = jax.block_until_ready(conv_nd_kernel1_layer(x2, weight2, bias2))
    ref2 = (jnp.einsum("oc,bcxyz->boxyz", weight2, x2)
            + bias2[None, :, None, None, None])
    assert y2.shape == (B2, C_out2, D2, H2, W2)
    assert jnp.allclose(y2, ref2, atol=1e-5, rtol=1e-5)

    print("KERNEL_OK")
</pallas_src>

<mosaic_0001>
module attributes {stable_mosaic.version = 11 : i64} {
  func.func @_conv1x1_kernel(%arg0: i32, %arg1: i32, %arg2: memref<2x4x256xf32, #tpu.memory_space<vmem>>, %arg3: memref<8x4xf32, #tpu.memory_space<vmem>>, %arg4: memref<8x1xf32, #tpu.memory_space<vmem>>, %arg5: memref<2x8x256xf32, #tpu.memory_space<vmem>>) attributes {dimension_semantics = [#tpu.dimension_semantics<parallel>, #tpu.dimension_semantics<parallel>], iteration_bounds = array<i64: 1, 1>, scalar_prefetch = 0 : i64, scratch_operands = 0 : i64, tpu.core_type = #tpu.core_type<tc>, window_params = [{transform_indices = @transform_0, window_bounds = array<i64: 2, 4, 256>}, {pipeline_mode = #tpu.pipeline_mode<synchronous>, transform_indices = @transform_1, window_bounds = array<i64: 8, 4>}, {pipeline_mode = #tpu.pipeline_mode<synchronous>, transform_indices = @transform_2, window_bounds = array<i64: 8, 1>}, {transform_indices = @transform_3, window_bounds = array<i64: 2, 8, 256>}]} {
    %c0 = arith.constant 0 : index
    %c0_0 = arith.constant 0 : index
    %0 = vector.load %arg3[%c0, %c0_0] : memref<8x4xf32, #tpu.memory_space<vmem>>, vector<8x4xf32>
    %c0_1 = arith.constant 0 : index
    %c0_2 = arith.constant 0 : index
    %1 = vector.load %arg4[%c0_1, %c0_2] : memref<8x1xf32, #tpu.memory_space<vmem>>, vector<8x1xf32>
    %c0_3 = arith.constant 0 : index
    %c0_4 = arith.constant 0 : index
    %c0_5 = arith.constant 0 : index
    %2 = vector.load %arg2[%c0_3, %c0_4, %c0_5] : memref<2x4x256xf32, #tpu.memory_space<vmem>>, vector<1x4x256xf32>
    %3 = vector.shape_cast %2 : vector<1x4x256xf32> to vector<4x256xf32>
    %cst = arith.constant dense<0.000000e+00> : vector<8x256xf32>
    %4 = tpu.matmul %0, %3, %cst {dimension_numbers = #tpu.dot_dimension_numbers<[1], [0], [0], [1], [0, 0, 1, 1], [], []>} : vector<8x4xf32>, vector<4x256xf32>, vector<8x256xf32> -> vector<8x256xf32>
    %5 = vector.broadcast %1 : vector<8x1xf32> to vector<8x256xf32>
    %6 = arith.addf %4, %5 : vector<8x256xf32>
    %c0_6 = arith.constant 0 : index
    %c0_7 = arith.constant 0 : index
    %c0_8 = arith.constant 0 : index
    %7 = vector.load %arg5[%c0_6, %c0_7, %c0_8] : memref<2x8x256xf32, #tpu.memory_space<vmem>>, vector<1x8x256xf32>
    %8 = vector.shape_cast %7 : vector<1x8x256xf32> to vector<8x256xf32>
    %9 = vector.shape_cast %6 : vector<8x256xf32> to vector<1x8x256xf32>
    tpu.vector_store %arg5[%c0_6, %c0_7, %c0_8], %9 {strides = array<i32>} : memref<2x8x256xf32, #tpu.memory_space<vmem>>, vector<1x8x256xf32>,
    %c1 = arith.constant 1 : index
    %c0_9 = arith.constant 0 : index
    %c0_10 = arith.constant 0 : index
    %10 = vector.load %arg2[%c1, %c0_9, %c0_10] : memref<2x4x256xf32, #tpu.memory_space<vmem>>, vector<1x4x256xf32>
    %11 = vector.shape_cast %10 : vector<1x4x256xf32> to vector<4x256xf32>
    %cst_11 = arith.constant dense<0.000000e+00> : vector<8x256xf32>
    %12 = tpu.matmul %0, %11, %cst_11 {dimension_numbers = #tpu.dot_dimension_numbers<[1], [0], [0], [1], [0, 0, 1, 1], [], []>} : vector<8x4xf32>, vector<4x256xf32>, vector<8x256xf32> -> vector<8x256xf32>
    %13 = vector.broadcast %1 : vector<8x1xf32> to vector<8x256xf32>
    %14 = arith.addf %12, %13 : vector<8x256xf32>
    %c1_12 = arith.constant 1 : index
    %c0_13 = arith.constant 0 : index
    %c0_14 = arith.constant 0 : index
    %15 = vector.load %arg5[%c1_12, %c0_13, %c0_14] : memref<2x8x256xf32, #tpu.memory_space<vmem>>, vector<1x8x256xf32>
    %16 = vector.shape_cast %15 : vector<1x8x256xf32> to vector<8x256xf32>
    %17 = vector.shape_cast %14 : vector<8x256xf32> to vector<1x8x256xf32>
    tpu.vector_store %arg5[%c1_12, %c0_13, %c0_14], %17 {strides = array<i32>} : memref<2x8x256xf32, #tpu.memory_space<vmem>>, vector<1x8x256xf32>,
    return
  }
  func.func @transform_0(%arg0: i32, %arg1: i32) -> (i32, i32, i32) {
    %c0_i32 = arith.constant 0 : i32
    %c0_i32_0 = arith.constant 0 : i32
    return %arg1, %c0_i32, %arg0 : i32, i32, i32
  }
  func.func @transform_1(%arg0: i32, %arg1: i32) -> (i32, i32) {
    %c0_i32 = arith.constant 0 : i32
    %c0_i32_0 = arith.constant 0 : i32
    %c0_i32_1 = arith.constant 0 : i32
    return %c0_i32, %c0_i32_0 : i32, i32
  }
  func.func @transform_2(%arg0: i32, %arg1: i32) -> (i32, i32) {
    %c0_i32 = arith.constant 0 : i32
    %c0_i32_0 = arith.constant 0 : i32
    %c0_i32_1 = arith.constant 0 : i32
    return %c0_i32, %c0_i32_0 : i32, i32
  }
  func.func @transform_3(%arg0: i32, %arg1: i32) -> (i32, i32, i32) {
    %c0_i32 = arith.constant 0 : i32
    %c0_i32_0 = arith.constant 0 : i32
    return %arg1, %c0_i32, %arg0 : i32, i32, i32
  }
}

</mosaic_0001>

<llo_original>
// kernel: conv_nd_kernel1_layer.1
$region0: #{conv_nd_kernel1_layer.1}
  #allocation0 [shape = 'u32[]', space=smem, size = 0x4, offset = 0x4, fixed_abs, tag = 'smem constant byte address 0x4 - core index']
  #allocation1 [shape = 'u32[72,128]{1,0:T(1,128)}', space=vmem, size = 0x9000, scoped, tag = 'internal scratch']
  %s0 = inlined_call_operand.vmem [shape: f32[2,4,256], index: 0, kind: input, shape index: {}]
  %s1 = inlined_call_operand.vmem [shape: f32[8,4], index: 1, kind: input, shape index: {}]
  %s2 = inlined_call_operand.vmem [shape: f32[8,1], index: 2, kind: input, shape index: {}]
  %s3 = inlined_call_operand.vmem [shape: f32[2,8,256], index: 3, kind: output, shape index: {}]
  %s4 = sld [smem:[#allocation0]]
  $region22: #{conv_nd_kernel1_layer.1} parent=0
    _
  %s6 = ssub.s32 1, %s4
  %s7 = scalar_select 0, %s6, %s4
  // Predicated region
  $region2: #{conv_nd_kernel1_layer.1} parent=0 // pred_check
    _
  $region3: #{conv_nd_kernel1_layer.1} parent=0 // pred_check_branch
    %9 = sbr.rel (0) target = $region5
  $region4: #{conv_nd_kernel1_layer.1} parent=0 // pred_region
    _
  $region5: #{conv_nd_kernel1_layer.1} parent=0 // pred_fallthru
    _
  // Predicated region
  $region6: #{conv_nd_kernel1_layer.1} parent=0 // pred_check
    _
  $region7: #{conv_nd_kernel1_layer.1} parent=0 // pred_check_branch
    %11 = sbr.rel (0) target = $region9
  $region8: #{conv_nd_kernel1_layer.1} parent=0 // pred_region
    _
  $region9: #{conv_nd_kernel1_layer.1} parent=0 // pred_fallthru
    _
  // Predicated region
  $region10: #{conv_nd_kernel1_layer.1} parent=0 // pred_check
    _
  $region11: #{conv_nd_kernel1_layer.1} parent=0 // pred_check_branch
    %13 = sbr.rel (0) target = $region13
  $region12: #{conv_nd_kernel1_layer.1} parent=0 // pred_region
    _
  $region13: #{conv_nd_kernel1_layer.1} parent=0 // pred_fallthru
    _
  %v14 = vld [vmem:[%s1] sm:$0xff]
  %v15 = vld [vmem:[%s2] sm:$0xff]
  %v16 = vld [vmem:[%s0] sm:$0xff]
  %18 = vset.pattern.permute.xlu0 0
  %19 = vperm.xlu0 %18, %v15
  %v20 = vpop.permute.xlu0 %19
  %23 = vst [vmem:[#allocation1] ss:$2 sm:$0xff] %v16
  %v24 = vld.sshfl [vmem:[#allocation1] sm:$0xff pattern:$0x75316420]
  %v25 = vld.sshfl [vmem:[#allocation1 + $0x8] sm:$0xff pattern:$0x75316420]
  %vm26 = vcmask 31744
  %v28 = vsel %vm26, %v14, 0
  %vm30 = vcmask 1043456
  %v31 = vsel %vm30, %v24, 0
  %v33 = vsel %vm30, %v25, 0
  %35 = vmatpush.msra.mxu0 0.0
  %36 = vmatpush.msra.mxu0 0.0
  %37 = vmatpush.msra.mxu0 0.0
  %38 = vmatpush.msra.mxu0 0.0
  %39 = vmatpush.msra.mxu0 0.0
  %40 = vmatpush.msra.mxu0 0.0
  %41 = vmatpush.msra.mxu0 0.0
  %42 = vmatpush.msra.mxu0 0.0
  %43 = vmatpush.msra.mxu0 0.0
  %44 = vmatpush.msra.mxu0 0.0
  %45 = vmatpush.msra.mxu0 0.0
  %46 = vmatpush.msra.mxu0 0.0
  %47 = vmatpush.msra.mxu0 0.0
  %48 = vmatpush.msra.mxu0 0.0
  %49 = vmatpush.msra.mxu0 0.0
  %50 = vmatpush.msra.mxu0 %v31
  %51 = vmatmul.f32.gmra.mxu0 %v28
  %v52 = vpop.f32.mrf.mxu0
  %v53 = vadd.f32 %v20, %v52
  %54 = vdwg.mxu0
  %55 = vmatpush.msra.mxu0 0.0
  %56 = vmatpush.msra.mxu0 0.0
  %57 = vmatpush.msra.mxu0 0.0
  %58 = vmatpush.msra.mxu0 0.0
  %59 = vmatpush.msra.mxu0 0.0
  %60 = vmatpush.msra.mxu0 0.0
  %61 = vmatpush.msra.mxu0 0.0
  %62 = vmatpush.msra.mxu0 0.0
  %63 = vmatpush.msra.mxu0 0.0
  %64 = vmatpush.msra.mxu0 0.0
  %65 = vmatpush.msra.mxu0 0.0
  %66 = vmatpush.msra.mxu0 0.0
  %67 = vmatpush.msra.mxu0 0.0
  %68 = vmatpush.msra.mxu0 0.0
  %69 = vmatpush.msra.mxu0 0.0
  %70 = vmatpush.msra.mxu0 %v33
  %71 = vmatmul.f32.gmra.mxu0 %v28
  %v72 = vpop.f32.mrf.mxu0
  %v73 = vadd.f32 %v20, %v72
  %74 = vdwg.mxu0
  %75 = vst [vmem:[%s3] sm:$0xff] %v53
  %76 = vst [vmem:[%s3 + $0x8] sm:$0xff] %v73
  %s77 = scalar_lea.vmem %s0, 8
  %v78 = vld [vmem:[%s77] sm:$0xff]
  %80 = vst [vmem:[#allocation1] ss:$2 sm:$0xff] %v78
  %v81 = vld.sshfl [vmem:[#allocation1] sm:$0xff pattern:$0x75316420]
  %v82 = vld.sshfl [vmem:[#allocation1 + $0x8] sm:$0xff pattern:$0x75316420]
  %v83 = vsel %vm30, %v81, 0
  %v85 = vsel %vm30, %v82, 0
  %87 = vmatpush.msra.mxu0 0.0
  %88 = vmatpush.msra.mxu0 0.0
  %89 = vmatpush.msra.mxu0 0.0
  %90 = vmatpush.msra.mxu0 0.0
  %91 = vmatpush.msra.mxu0 0.0
  %92 = vmatpush.msra.mxu0 0.0
  %93 = vmatpush.msra.mxu0 0.0
  %94 = vmatpush.msra.mxu0 0.0
  %95 = vmatpush.msra.mxu0 0.0
  %96 = vmatpush.msra.mxu0 0.0
  %97 = vmatpush.msra.mxu0 0.0
  %98 = vmatpush.msra.mxu0 0.0
  %99 = vmatpush.msra.mxu0 0.0
  %100 = vmatpush.msra.mxu0 0.0
  %101 = vmatpush.msra.mxu0 0.0
  %102 = vmatpush.msra.mxu0 %v83
  %103 = vmatmul.f32.gmra.mxu0 %v28
  %v104 = vpop.f32.mrf.mxu0
  %v105 = vadd.f32 %v20, %v104
  %106 = vdwg.mxu0
  %107 = vmatpush.msra.mxu0 0.0
  %108 = vmatpush.msra.mxu0 0.0
  %109 = vmatpush.msra.mxu0 0.0
  %110 = vmatpush.msra.mxu0 0.0
  %111 = vmatpush.msra.mxu0 0.0
  %112 = vmatpush.msra.mxu0 0.0
  %113 = vmatpush.msra.mxu0 0.0
  %114 = vmatpush.msra.mxu0 0.0
  %115 = vmatpush.msra.mxu0 0.0
  %116 = vmatpush.msra.mxu0 0.0
  %117 = vmatpush.msra.mxu0 0.0
  %118 = vmatpush.msra.mxu0 0.0
  %119 = vmatpush.msra.mxu0 0.0
  %120 = vmatpush.msra.mxu0 0.0
  %121 = vmatpush.msra.mxu0 0.0
  %122 = vmatpush.msra.mxu0 %v85
  %123 = vmatmul.f32.gmra.mxu0 %v28
  %v124 = vpop.f32.mrf.mxu0
  %v125 = vadd.f32 %v20, %v124
  %126 = vdwg.mxu0
  %s127 = scalar_lea.vmem %s3, 16
  %128 = vst [vmem:[%s127] sm:$0xff] %v105
  %129 = vst [vmem:[%s127 + $0x8] sm:$0xff] %v125
  // Predicated region
  $region14: #{conv_nd_kernel1_layer.1} parent=0 // pred_check
    _
  $region15: #{conv_nd_kernel1_layer.1} parent=0 // pred_check_branch
    %131 = sbr.rel (0) target = $region17
  $region16: #{conv_nd_kernel1_layer.1} parent=0 // pred_region
    _
  $region17: #{conv_nd_kernel1_layer.1} parent=0 // pred_fallthru
    _
  // Predicated region
  $region18: #{conv_nd_kernel1_layer.1} parent=0 // pred_check
    _
  $region19: #{conv_nd_kernel1_layer.1} parent=0 // pred_check_branch
    %133 = sbr.rel (0) target = $region21
  $region20: #{conv_nd_kernel1_layer.1} parent=0 // pred_region
    _
  $region21: #{conv_nd_kernel1_layer.1} parent=0 // pred_fallthru
    _

</llo_original>
